<compile_context>
chip_gen: v6e
topology: v6e:2x2x1
jax: 0.10.0
libtpu: 0.0.40
codegen_flags: <defaults>
</compile_context>

<pallas_src>
import functools

import jax
import jax.numpy as jnp
from jax import lax
from jax.experimental import pallas as pl
from jax.experimental.pallas import tpu as pltpu

_LANE = 128
_SUB = 8
_MAX_BLOCK_ROWS = 2048  # (2048, 128) f32 tile = 1 MiB per input per step


def _tensorcores_per_chip():
    """Best-effort TensorCores-per-chip query; drives the parallel grid axis."""
    try:
        kind = jax.devices()[0].device_kind.lower()
    except Exception:
        return 1
    if "lite" in kind or "v5e" in kind or "v6e" in kind:
        return 1
    if "v4" in kind or "v5p" in kind or "v7" in kind or "7x" in kind:
        return 2
    return 1


def _dice_partials_kernel(x_ref, t_ref, o_ref, *, rows, block_rows):
    """Accumulate vreg-shaped partial sums into the resident (1,2,8,128) block.

    o[0, 0] = per-(sublane, lane)-bucket sum(sigmoid(x) * t)
    o[0, 1] = per-bucket sum(sigmoid(x) + t)
    """
    p = pl.program_id(0)
    i = pl.program_id(1)
    bidx = p * pl.num_programs(1) + i  # logical block index
    row0 = bidx * block_rows           # first logical row of this block

    @pl.when(i == 0)
    def _():
        o_ref[...] = jnp.zeros_like(o_ref)

    def accumulate(masked):
        x = x_ref[...].astype(jnp.float32)
        t = t_ref[...].astype(jnp.float32)
        # TODO(synk): on v7x, pl.reciprocal(1 + exp(-x), approx=True) keeps the
        # divide on the EUP slot; skipped to preserve exact-sigmoid tolerance.
        s = jax.nn.sigmoid(x)
        if masked:
            rid = row0 + lax.broadcasted_iota(jnp.int32, (block_rows, _LANE), 0)
            valid = rid < rows
            s = jnp.where(valid, s, 0.0)
            t = jnp.where(valid, t, 0.0)

        def vreduce(v):
            # (block_rows,128) -> (block_rows//8, 8, 128) -> (8, 128):
            # pure vreg-wise VPU adds, no per-step cross-lane XLU reduction.
            return jnp.sum(v.reshape(block_rows // _SUB, _SUB, _LANE), axis=0)

        o_ref[0, 0] += vreduce(s * t)
        o_ref[0, 1] += vreduce(s + t)

    is_full = row0 + block_rows <= rows  # rows / block_rows are trace-time ints

    @pl.when(is_full)
    def _():
        accumulate(masked=False)

    @pl.when(jnp.logical_not(is_full))
    def _():
        # Partial last block (or rounding block on a 2-slice grid): rows past
        # `rows` hold unspecified data (no padding copy was made) — zero them.
        accumulate(masked=True)


def dice_loss(inputs, targets, smooth=1.0):
    """Pallas equivalent of DiceLoss.forward(inputs, targets, smooth)."""
    x = inputs.reshape(-1)
    t = targets.reshape(-1)
    n = x.shape[0]

    aligned = (n // _LANE) * _LANE
    tail = n - aligned

    # Sub-lane-width flat tail (< 128 elements): plain jnp in the wrapper.
    # When n is a multiple of 128 (common case) the main-slab reshape below is
    # a free bitcast — no pad, no copy.
    if tail:
        xs_t = jax.nn.sigmoid(x[aligned:].astype(jnp.float32))
        tt_t = t[aligned:].astype(jnp.float32)
        inter_tail = jnp.sum(xs_t * tt_t)
        st_tail = jnp.sum(xs_t + tt_t)
        x = x[:aligned]
        t = t[:aligned]
    else:
        inter_tail = jnp.float32(0.0)
        st_tail = jnp.float32(0.0)

    rows = aligned // _LANE
    if rows == 0:
        inter = inter_tail
        st = st_tail
    else:
        block_rows = min(_MAX_BLOCK_ROWS, ((rows + _SUB - 1) // _SUB) * _SUB)
        blocks_needed = -(-rows // block_rows)

        # Parallel slices only where there is a second TensorCore to feed.
        num_slices = max(1, min(_tensorcores_per_chip(), blocks_needed))
        steps = -(-blocks_needed // num_slices)
        last_block = blocks_needed - 1

        x2 = x.reshape(rows, _LANE)
        t2 = t.reshape(rows, _LANE)

        def tile_map(p, i):
            # Clamp so a rounding block (odd blocks_needed on a 2-slice grid)
            # never issues an out-of-bounds DMA; its contribution is masked to
            # zero in-kernel via the logical block index.
            return (jnp.minimum(p * steps + i, last_block), 0)

        tile_spec = pl.BlockSpec((block_rows, _LANE), tile_map)

        kernel = functools.partial(
            _dice_partials_kernel, rows=rows, block_rows=block_rows)

        partials = pl.pallas_call(
            kernel,
            out_shape=jax.ShapeDtypeStruct(
                (num_slices, 2, _SUB, _LANE), jnp.float32),
            grid_spec=pltpu.PrefetchScalarGridSpec(
                num_scalar_prefetch=0,
                grid=(num_slices, steps),
                in_specs=[tile_spec, tile_spec],
                out_specs=pl.BlockSpec((1, 2, _SUB, _LANE),
                                       lambda p, i: (p, 0, 0, 0)),
            ),
            compiler_params=pltpu.CompilerParams(
                dimension_semantics=("parallel", "arbitrary"),
            ),
        )(x2, t2)

        inter = jnp.sum(partials[:, 0]) + inter_tail
        st = jnp.sum(partials[:, 1]) + st_tail

    dice = (2.0 * inter + smooth) / (st + smooth)
    return 1.0 - dice


def _dice_loss_ref(inputs, targets, smooth=1.0):
    s = jax.nn.sigmoid(inputs.reshape(-1).astype(jnp.float32))
    t = targets.reshape(-1).astype(jnp.float32)
    inter = jnp.sum(s * t)
    dice = (2.0 * inter + smooth) / (jnp.sum(s) + jnp.sum(t) + smooth)
    return 1.0 - dice


if __name__ == "__main__":
    key = jax.random.PRNGKey(0)
    k1, k2, k3, k4, k5, k6 = jax.random.split(key, 6)

    # Small NCHW segmentation-style case (single aligned tile).
    x = jax.random.normal(k1, (2, 4, 16, 16), dtype=jnp.float32)
    tgt = (jax.random.uniform(k2, (2, 4, 16, 16)) > 0.5).astype(jnp.float32)
    loss = jax.block_until_ready(dice_loss(x, tgt, smooth=1.0))
    ref = _dice_loss_ref(x, tgt, smooth=1.0)
    assert jnp.allclose(loss, ref, rtol=1e-4, atol=1e-5), (loss, ref)

    # Misaligned size: exercises in-kernel row masking + the <128-elem jnp tail.
    x2 = jax.random.normal(k3, (2, 3, 50, 20), dtype=jnp.float32)
    tgt2 = (jax.random.uniform(k4, (2, 3, 50, 20)) > 0.5).astype(jnp.float32)
    loss2 = jax.block_until_ready(dice_loss(x2, tgt2, smooth=1.0))
    ref2 = _dice_loss_ref(x2, tgt2, smooth=1.0)
    assert jnp.allclose(loss2, ref2, rtol=1e-4, atol=1e-4), (loss2, ref2)

    # Larger aligned case; bf16 logits pass through uncast and widen in-kernel.
    x3 = jax.random.normal(k5, (2, 4, 96, 96), dtype=jnp.bfloat16)
    tgt3 = (jax.random.uniform(k6, (2, 4, 96, 96)) > 0.5).astype(jnp.float32)
    loss3 = jax.block_until_ready(dice_loss(x3, tgt3, smooth=1.0))
    ref3 = _dice_loss_ref(x3.astype(jnp.float32), tgt3, smooth=1.0)
    assert jnp.allclose(loss3, ref3, rtol=1e-4, atol=1e-4), (loss3, ref3)

    print("KERNEL_OK")
</pallas_src>

<mosaic_0001>
module attributes {stable_mosaic.version = 11 : i64} {
  func.func @_dice_partials_kernel(%arg0: i32, %arg1: i32, %arg2: memref<16x128xf32, #tpu.memory_space<vmem>>, %arg3: memref<16x128xf32, #tpu.memory_space<vmem>>, %arg4: memref<1x2x8x128xf32, #tpu.memory_space<vmem>>) attributes {dimension_semantics = [#tpu.dimension_semantics<parallel>, #tpu.dimension_semantics<arbitrary>], iteration_bounds = array<i64: 1, 1>, scalar_prefetch = 0 : i64, scratch_operands = 0 : i64, tpu.core_type = #tpu.core_type<tc>, window_params = [{transform_indices = @transform_0, window_bounds = array<i64: 16, 128>}, {transform_indices = @transform_1, window_bounds = array<i64: 16, 128>}, {transform_indices = @transform_2, window_bounds = array<i64: 1, 2, 8, 128>}]} {
    %c1_i32 = arith.constant 1 : i32
    %0 = arith.muli %arg0, %c1_i32 : i32
    %1 = arith.addi %0, %arg1 : i32
    %c16_i32 = arith.constant 16 : i32
    %2 = arith.muli %1, %c16_i32 : i32
    %c0_i32 = arith.constant 0 : i32
    %3 = arith.cmpi eq, %arg1, %c0_i32 : i32
    %4 = arith.extui %3 : i1 to i32
    %c0_i32_0 = arith.constant 0 : i32
    %5 = arith.cmpi ne, %4, %c0_i32_0 : i32
    scf.if %5 {
      %cst = arith.constant 0.000000e+00 : f32
      %13 = vector.broadcast %cst : f32 to vector<1x2x8x128xf32>
      %c0 = arith.constant 0 : index
      %c0_5 = arith.constant 0 : index
      %c0_6 = arith.constant 0 : index
      %c0_7 = arith.constant 0 : index
      %14 = vector.load %arg4[%c0, %c0_5, %c0_6, %c0_7] : memref<1x2x8x128xf32, #tpu.memory_space<vmem>>, vector<1x2x8x128xf32>
      tpu.vector_store %arg4[%c0, %c0_5, %c0_6, %c0_7], %13 {strides = array<i32>} : memref<1x2x8x128xf32, #tpu.memory_space<vmem>>, vector<1x2x8x128xf32>,
    } else {
    }
    %c16_i32_1 = arith.constant 16 : i32
    %6 = arith.addi %2, %c16_i32_1 : i32
    %c16_i32_2 = arith.constant 16 : i32
    %7 = arith.cmpi sle, %6, %c16_i32_2 : i32
    %8 = arith.extui %7 : i1 to i32
    %c0_i32_3 = arith.constant 0 : i32
    %9 = arith.cmpi ne, %8, %c0_i32_3 : i32
    scf.if %9 {
      %c0 = arith.constant 0 : index
      %c0_5 = arith.constant 0 : index
      %13 = vector.load %arg2[%c0, %c0_5] : memref<16x128xf32, #tpu.memory_space<vmem>>, vector<16x128xf32>
      %c0_6 = arith.constant 0 : index
      %c0_7 = arith.constant 0 : index
      %14 = vector.load %arg3[%c0_6, %c0_7] : memref<16x128xf32, #tpu.memory_space<vmem>>, vector<16x128xf32>
      %15 = arith.negf %13 : vector<16x128xf32>
      %16 = math.exp %15 : vector<16x128xf32>
      %cst = arith.constant 1.000000e+00 : f32
      %17 = vector.broadcast %cst : f32 to vector<16x128xf32>
      %18 = arith.addf %17, %16 : vector<16x128xf32>
      %19 = arith.divf %17, %18 : vector<16x128xf32>
      %c0_8 = arith.constant 0 : index
      %c0_9 = arith.constant 0 : index
      %c0_10 = arith.constant 0 : index
      %c0_11 = arith.constant 0 : index
      %20 = vector.load %arg4[%c0_8, %c0_9, %c0_10, %c0_11] : memref<1x2x8x128xf32, #tpu.memory_space<vmem>>, vector<1x1x8x128xf32>
      %21 = vector.shape_cast %20 : vector<1x1x8x128xf32> to vector<8x128xf32>
      %22 = arith.mulf %19, %14 : vector<16x128xf32>
      %23 = vector.shape_cast %22 : vector<16x128xf32> to vector<2x8x128xf32>
      %cst_12 = arith.constant dense<0.000000e+00> : vector<8x128xf32>
      %24 = vector.multi_reduction <add>, %23, %cst_12 [0] : vector<2x8x128xf32> to vector<8x128xf32>
      %25 = arith.addf %21, %24 : vector<8x128xf32>
      %c0_13 = arith.constant 0 : index
      %c0_14 = arith.constant 0 : index
      %c0_15 = arith.constant 0 : index
      %c0_16 = arith.constant 0 : index
      %26 = vector.load %arg4[%c0_13, %c0_14, %c0_15, %c0_16] : memref<1x2x8x128xf32, #tpu.memory_space<vmem>>, vector<1x1x8x128xf32>
      %27 = vector.shape_cast %26 : vector<1x1x8x128xf32> to vector<8x128xf32>
      %28 = vector.shape_cast %25 : vector<8x128xf32> to vector<1x1x8x128xf32>
      tpu.vector_store %arg4[%c0_13, %c0_14, %c0_15, %c0_16], %28 {strides = array<i32>} : memref<1x2x8x128xf32, #tpu.memory_space<vmem>>, vector<1x1x8x128xf32>,
      %c0_17 = arith.constant 0 : index
      %c1 = arith.constant 1 : index
      %c0_18 = arith.constant 0 : index
      %c0_19 = arith.constant 0 : index
      %29 = vector.load %arg4[%c0_17, %c1, %c0_18, %c0_19] : memref<1x2x8x128xf32, #tpu.memory_space<vmem>>, vector<1x1x8x128xf32>
      %30 = vector.shape_cast %29 : vector<1x1x8x128xf32> to vector<8x128xf32>
      %31 = arith.addf %19, %14 : vector<16x128xf32>
      %32 = vector.shape_cast %31 : vector<16x128xf32> to vector<2x8x128xf32>
      %cst_20 = arith.constant dense<0.000000e+00> : vector<8x128xf32>
      %33 = vector.multi_reduction <add>, %32, %cst_20 [0] : vector<2x8x128xf32> to vector<8x128xf32>
      %34 = arith.addf %30, %33 : vector<8x128xf32>
      %c0_21 = arith.constant 0 : index
      %c1_22 = arith.constant 1 : index
      %c0_23 = arith.constant 0 : index
      %c0_24 = arith.constant 0 : index
      %35 = vector.load %arg4[%c0_21, %c1_22, %c0_23, %c0_24] : memref<1x2x8x128xf32, #tpu.memory_space<vmem>>, vector<1x1x8x128xf32>
      %36 = vector.shape_cast %35 : vector<1x1x8x128xf32> to vector<8x128xf32>
      %37 = vector.shape_cast %34 : vector<8x128xf32> to vector<1x1x8x128xf32>
      tpu.vector_store %arg4[%c0_21, %c1_22, %c0_23, %c0_24], %37 {strides = array<i32>} : memref<1x2x8x128xf32, #tpu.memory_space<vmem>>, vector<1x1x8x128xf32>,
    } else {
    }
    %true = arith.constant true
    %10 = arith.xori %7, %true : i1
    %11 = arith.extui %10 : i1 to i32
    %c0_i32_4 = arith.constant 0 : i32
    %12 = arith.cmpi ne, %11, %c0_i32_4 : i32
    scf.if %12 {
      %c0 = arith.constant 0 : index
      %c0_5 = arith.constant 0 : index
      %13 = vector.load %arg2[%c0, %c0_5] : memref<16x128xf32, #tpu.memory_space<vmem>>, vector<16x128xf32>
      %c0_6 = arith.constant 0 : index
      %c0_7 = arith.constant 0 : index
      %14 = vector.load %arg3[%c0_6, %c0_7] : memref<16x128xf32, #tpu.memory_space<vmem>>, vector<16x128xf32>
      %15 = arith.negf %13 : vector<16x128xf32>
      %16 = math.exp %15 : vector<16x128xf32>
      %cst = arith.constant 1.000000e+00 : f32
      %17 = vector.broadcast %cst : f32 to vector<16x128xf32>
      %18 = arith.addf %17, %16 : vector<16x128xf32>
      %19 = arith.divf %17, %18 : vector<16x128xf32>
      %20 = tpu.iota {dimensions = array<i32: 0>} : vector<16x128xi32>
      %21 = vector.broadcast %2 : i32 to vector<16x128xi32>
      %22 = arith.addi %21, %20 : vector<16x128xi32>
      %c16_i32_8 = arith.constant 16 : i32
      %23 = vector.broadcast %c16_i32_8 : i32 to vector<16x128xi32>
      %24 = arith.cmpi slt, %22, %23 : vector<16x128xi32>
      %cst_9 = arith.constant 0.000000e+00 : f32
      %25 = vector.broadcast %cst_9 : f32 to vector<16x128xf32>
      %26 = arith.select %24, %19, %25 : vector<16x128xi1>, vector<16x128xf32>
      %cst_10 = arith.constant 0.000000e+00 : f32
      %27 = vector.broadcast %cst_10 : f32 to vector<16x128xf32>
      %28 = arith.select %24, %14, %27 : vector<16x128xi1>, vector<16x128xf32>
      %c0_11 = arith.constant 0 : index
      %c0_12 = arith.constant 0 : index
      %c0_13 = arith.constant 0 : index
      %c0_14 = arith.constant 0 : index
      %29 = vector.load %arg4[%c0_11, %c0_12, %c0_13, %c0_14] : memref<1x2x8x128xf32, #tpu.memory_space<vmem>>, vector<1x1x8x128xf32>
      %30 = vector.shape_cast %29 : vector<1x1x8x128xf32> to vector<8x128xf32>
      %31 = arith.mulf %26, %28 : vector<16x128xf32>
      %32 = vector.shape_cast %31 : vector<16x128xf32> to vector<2x8x128xf32>
      %cst_15 = arith.constant dense<0.000000e+00> : vector<8x128xf32>
      %33 = vector.multi_reduction <add>, %32, %cst_15 [0] : vector<2x8x128xf32> to vector<8x128xf32>
      %34 = arith.addf %30, %33 : vector<8x128xf32>
      %c0_16 = arith.constant 0 : index
      %c0_17 = arith.constant 0 : index
      %c0_18 = arith.constant 0 : index
      %c0_19 = arith.constant 0 : index
      %35 = vector.load %arg4[%c0_16, %c0_17, %c0_18, %c0_19] : memref<1x2x8x128xf32, #tpu.memory_space<vmem>>, vector<1x1x8x128xf32>
      %36 = vector.shape_cast %35 : vector<1x1x8x128xf32> to vector<8x128xf32>
      %37 = vector.shape_cast %34 : vector<8x128xf32> to vector<1x1x8x128xf32>
      tpu.vector_store %arg4[%c0_16, %c0_17, %c0_18, %c0_19], %37 {strides = array<i32>} : memref<1x2x8x128xf32, #tpu.memory_space<vmem>>, vector<1x1x8x128xf32>,
      %c0_20 = arith.constant 0 : index
      %c1 = arith.constant 1 : index
      %c0_21 = arith.constant 0 : index
      %c0_22 = arith.constant 0 : index
      %38 = vector.load %arg4[%c0_20, %c1, %c0_21, %c0_22] : memref<1x2x8x128xf32, #tpu.memory_space<vmem>>, vector<1x1x8x128xf32>
      %39 = vector.shape_cast %38 : vector<1x1x8x128xf32> to vector<8x128xf32>
      %40 = arith.addf %26, %28 : vector<16x128xf32>
      %41 = vector.shape_cast %40 : vector<16x128xf32> to vector<2x8x128xf32>
      %cst_23 = arith.constant dense<0.000000e+00> : vector<8x128xf32>
      %42 = vector.multi_reduction <add>, %41, %cst_23 [0] : vector<2x8x128xf32> to vector<8x128xf32>
      %43 = arith.addf %39, %42 : vector<8x128xf32>
      %c0_24 = arith.constant 0 : index
      %c1_25 = arith.constant 1 : index
      %c0_26 = arith.constant 0 : index
      %c0_27 = arith.constant 0 : index
      %44 = vector.load %arg4[%c0_24, %c1_25, %c0_26, %c0_27] : memref<1x2x8x128xf32, #tpu.memory_space<vmem>>, vector<1x1x8x128xf32>
      %45 = vector.shape_cast %44 : vector<1x1x8x128xf32> to vector<8x128xf32>
      %46 = vector.shape_cast %43 : vector<8x128xf32> to vector<1x1x8x128xf32>
      tpu.vector_store %arg4[%c0_24, %c1_25, %c0_26, %c0_27], %46 {strides = array<i32>} : memref<1x2x8x128xf32, #tpu.memory_space<vmem>>, vector<1x1x8x128xf32>,
    } else {
    }
    return
  }
  func.func @transform_0(%arg0: i32, %arg1: i32) -> (i32, i32) {
    %c1_i32 = arith.constant 1 : i32
    %0 = arith.muli %arg0, %c1_i32 : i32
    %1 = arith.addi %0, %arg1 : i32
    %c0_i32 = arith.constant 0 : i32
    %2 = arith.minsi %1, %c0_i32 : i32
    %c0_i32_0 = arith.constant 0 : i32
    %c0_i32_1 = arith.constant 0 : i32
    return %2, %c0_i32_0 : i32, i32
  }
  func.func @transform_1(%arg0: i32, %arg1: i32) -> (i32, i32) {
    %c1_i32 = arith.constant 1 : i32
    %0 = arith.muli %arg0, %c1_i32 : i32
    %1 = arith.addi %0, %arg1 : i32
    %c0_i32 = arith.constant 0 : i32
    %2 = arith.minsi %1, %c0_i32 : i32
    %c0_i32_0 = arith.constant 0 : i32
    %c0_i32_1 = arith.constant 0 : i32
    return %2, %c0_i32_0 : i32, i32
  }
  func.func @transform_2(%arg0: i32, %arg1: i32) -> (i32, i32, i32, i32) {
    %c0_i32 = arith.constant 0 : i32
    %c0_i32_0 = arith.constant 0 : i32
    %c0_i32_1 = arith.constant 0 : i32
    %c0_i32_2 = arith.constant 0 : i32
    return %arg0, %c0_i32, %c0_i32_0, %c0_i32_1 : i32, i32, i32, i32
  }
}

</mosaic_0001>

<llo_original>
// kernel: tpu_custom_call.1
$region0: #{tpu_custom_call.1}
  #allocation0 [shape = 'u32[]', space=smem, size = 0x4, offset = 0x4, fixed_abs, tag = 'smem constant byte address 0x4 - core index']
  #allocation1 [shape = 'u32[144,128]{1,0:T(1,128)}', space=vmem, size = 0x12000, scoped, tag = 'internal scratch']
  %s0 = inlined_call_operand.hbm [shape: f32[16,128], index: 0, kind: input, shape index: {}]
  %s1 = inlined_call_operand.hbm [shape: f32[16,128], index: 1, kind: input, shape index: {}]
  %s2 = inlined_call_operand.hbm [shape: f32[1,2,8,128], index: 2, kind: output, shape index: {}]
  %s3 = sld [smem:[#allocation0]]
  $region38: #{tpu_custom_call.1} parent=0
    _
  %s5 = ssub.s32 1, %s3
  %s6 = scalar_select 0, %s5, %s3
  $region1: #{tpu_custom_call.1} parent=0
    #allocation2 [shape = 'u8[8192]{0}', space=vmem, size = 0x2000, scoped, tag = 'input window, operand 0, single buffered']
    #allocation3 [shape = 's32[1]{0}', space=sflag, size = 0x4, scoped, tag = 'scoped memory for tpu_custom_call.1']
    #allocation4 [shape = 's32[1]{0}', space=sflag, size = 0x4, scoped, tag = 'scoped memory for tpu_custom_call.1']
    #allocation5 [shape = 'u8[8192]{0}', space=vmem, size = 0x2000, scoped, tag = 'input window, operand 1, single buffered']
    #allocation6 [shape = 's32[1]{0}', space=sflag, size = 0x4, scoped, tag = 'scoped memory for tpu_custom_call.1']
    #allocation7 [shape = 'u8[8192]{0}', space=vmem, size = 0x2000, scoped, tag = 'output window, operand 0, single buffered']
    %7 = vsyncpa [#allocation3], 0
    %8 = vsyncpa [#allocation6], 0
    %9 = vsyncpa [#allocation4], 0
    // Predicated region
    $region2: #{tpu_custom_call.1} parent=1 // pred_check
      _
    $region3: #{tpu_custom_call.1} parent=1 // pred_check_branch
      %11 = sbr.rel (0) target = $region5
    $region4: #{tpu_custom_call.1} parent=1 // pred_region
      %s12 = sadd.s32 0, 0
      %p13 = scmp.lt.s32.totalorder %s12, 0
      %s14 = scalar_select %p13, %s12, 0
      %s15 = smul.u32 2, %s14
      %s17 = ssub.s32 256, 256
      %18 = vsyncadd [#allocation3], %s17
      %s19 = smul.addr %s15, 128
      %s20 = scalar_lea.hbm %s0, %s19
      %s21 = sshll.u32 [#allocation2], 4
      %s22 = int_to_ptr.vmem [resolvable:$true] %s21
      %27 = dma.hbm_to_vmem [thread:$0]  %s20, 256, %s22, [#allocation3], 128, 128, 8
    $region5: #{tpu_custom_call.1} parent=1 // pred_fallthru
      _
    // Predicated region
    $region6: #{tpu_custom_call.1} parent=1 // pred_check
      _
    $region7: #{tpu_custom_call.1} parent=1 // pred_check_branch
      %29 = sbr.rel (0) target = $region9
    $region8: #{tpu_custom_call.1} parent=1 // pred_region
      %s30 = sadd.s32 0, 0
      %p31 = scmp.lt.s32.totalorder %s30, 0
      %s32 = scalar_select %p31, %s30, 0
      %s33 = smul.u32 2, %s32
      %s35 = ssub.s32 256, 256
      %36 = vsyncadd [#allocation6], %s35
      %s37 = smul.addr %s33, 128
      %s38 = scalar_lea.hbm %s1, %s37
      %s39 = sshll.u32 [#allocation5], 4
      %s40 = int_to_ptr.vmem [resolvable:$true] %s39
      %45 = dma.hbm_to_vmem [thread:$0]  %s38, 256, %s40, [#allocation6], 128, 128, 8
    $region9: #{tpu_custom_call.1} parent=1 // pred_fallthru
      _
    // Predicated region
    $region10: #{tpu_custom_call.1} parent=1 // pred_check
      _
    $region11: #{tpu_custom_call.1} parent=1 // pred_check_branch
      %47 = sbr.rel (0) target = $region13
    $region12: #{tpu_custom_call.1} parent=1 // pred_region
      %48 = dma.done [#allocation3], 256
    $region13: #{tpu_custom_call.1} parent=1 // pred_fallthru
      _
    // Predicated region
    $region14: #{tpu_custom_call.1} parent=1 // pred_check
      _
    $region15: #{tpu_custom_call.1} parent=1 // pred_check_branch
      %50 = sbr.rel (0) target = $region17
    $region16: #{tpu_custom_call.1} parent=1 // pred_region
      %51 = dma.done [#allocation6], 256
    $region17: #{tpu_custom_call.1} parent=1 // pred_fallthru
      _
    %s52 = sadd.s32 0, 0
    %p53 = scmp.lt.s32.totalorder %s52, 0
    %s54 = scalar_select %p53, %s52, 0
    %s55 = smul.u32 2, %s54
    %s56 = sadd.s32 0, 0
    %p57 = scmp.lt.s32.totalorder %s56, 0
    %s58 = scalar_select %p57, %s56, 0
    %s59 = smul.u32 2, %s58
    %s60 = sadd.s32 0, 0
    %s61 = smul.u32 %s60, 16
    %p62 = scmp.eq.s32.totalorder 0, 0
    // Predicated region
    $region18: #{tpu_custom_call.1} parent=1 // pred_check
      %p63 = pneg %p62
    $region19: #{tpu_custom_call.1} parent=1 // pred_check_branch
      %65 = sbr.rel (%p63) target = $region21
    $region20: #{tpu_custom_call.1} parent=1 // pred_region
      %66 = vst [vmem:[#allocation7] sm:$0xff] 0.0
      %67 = vst [vmem:[#allocation7 + $0x8] sm:$0xff] 0.0
    $region21: #{tpu_custom_call.1} parent=1 // pred_fallthru
      _
    %s68 = sadd.s32 %s61, 16
    %p69 = scmp.le.s32.totalorder %s68, 16
    // Predicated region
    $region22: #{tpu_custom_call.1} parent=1 // pred_check
      %p70 = pneg %p69
    $region23: #{tpu_custom_call.1} parent=1 // pred_check_branch
      %72 = sbr.rel (%p70) target = $region25
    $region24: #{tpu_custom_call.1} parent=1 // pred_region
      %v73 = vld [vmem:[#allocation2] sm:$0xff]
      %v74 = vld [vmem:[#allocation2 + $0x8] sm:$0xff]
      %v75 = vld [vmem:[#allocation5] sm:$0xff]
      %v76 = vld [vmem:[#allocation5 + $0x8] sm:$0xff]
      %v77 = vxor.u32 %v73, 2147483648
      %v78 = vxor.u32 %v74, 2147483648
      %v79 = vmul.f32 %v77, 1.442695
      %v80 = vpow.pop %v79
      %v81 = vmul.f32 %v78, 1.442695
      %v82 = vpow.pop %v81
      %v83 = vadd.f32 %v80, 1.0
      %v84 = vadd.f32 %v82, 1.0
      %v85 = vrcp.pop %v83
      %v86 = vmul.f32 1.0, %v85
      %v87 = vrcp.pop %v84
      %v88 = vmul.f32 1.0, %v87
      %v89 = vld [vmem:[#allocation7] sm:$0xff]
      %v90 = vmul.f32 %v86, %v75
      %v91 = vmul.f32 %v88, %v76
      %v92 = vadd.f32 %v90, %v91
      %v93 = vadd.f32 %v89, %v92
      %94 = vst [vmem:[#allocation7] sm:$0xff] %v93
      %s95 = scalar_lea.vmem [#allocation7], 8
      %v96 = vld [vmem:[%s95] sm:$0xff]
      %v97 = vadd.f32 %v86, %v75
      %v98 = vadd.f32 %v88, %v76
      %v99 = vadd.f32 %v97, %v98
      %v100 = vadd.f32 %v96, %v99
      %101 = vst [vmem:[%s95] sm:$0xff] %v100
    $region25: #{tpu_custom_call.1} parent=1 // pred_fallthru
      _
    %p102 = scmp.gt.s32.totalorder %s68, 16
    // Predicated region
    $region26: #{tpu_custom_call.1} parent=1 // pred_check
      %p103 = pneg %p102
    $region27: #{tpu_custom_call.1} parent=1 // pred_check_branch
      %105 = sbr.rel (%p103) target = $region29
    $region28: #{tpu_custom_call.1} parent=1 // pred_region
      %v106 = vld [vmem:[#allocation2] sm:$0xff]
      %v107 = vld [vmem:[#allocation2 + $0x8] sm:$0xff]
      %v108 = vld [vmem:[#allocation5] sm:$0xff]
      %v109 = vld [vmem:[#allocation5 + $0x8] sm:$0xff]
      %v110 = vxor.u32 %v106, 2147483648
      %v111 = vxor.u32 %v107, 2147483648
      %v112 = vmul.f32 %v110, 1.442695
      %v113 = vpow.pop %v112
      %v114 = vmul.f32 %v111, 1.442695
      %v115 = vpow.pop %v114
      %v116 = vadd.f32 %v113, 1.0
      %v117 = vadd.f32 %v115, 1.0
      %v118 = vrcp.pop %v116
      %v119 = vmul.f32 1.0, %v118
      %v120 = vrcp.pop %v117
      %v121 = vmul.f32 1.0, %v120
      %v122 = vlaneseq
      %v123 = vshrl.u32 %v122, 7
      %v124 = vadd.s32 %v123, 8
      %v125 = vstv %s61
      %v126 = vadd.s32 %v125, %v123
      %v127 = vadd.s32 %v125, %v124
      %vm128 = vcmp.lt.s32.totalorder %v126, 16
      %vm129 = vcmp.lt.s32.totalorder %v127, 16
      %v130 = vsel %vm128, %v119, 0.0
      %v131 = vsel %vm129, %v121, 0.0
      %v132 = vsel %vm128, %v108, 0.0
      %v133 = vsel %vm129, %v109, 0.0
      %v134 = vld [vmem:[#allocation7] sm:$0xff]
      %v135 = vmul.f32 %v130, %v132
      %v136 = vmul.f32 %v131, %v133
      %v137 = vadd.f32 %v135, %v136
      %v138 = vadd.f32 %v134, %v137
      %139 = vst [vmem:[#allocation7] sm:$0xff] %v138
      %s140 = scalar_lea.vmem [#allocation7], 8
      %v141 = vld [vmem:[%s140] sm:$0xff]
      %v142 = vadd.f32 %v130, %v132
      %v143 = vadd.f32 %v131, %v133
      %v144 = vadd.f32 %v142, %v143
      %v145 = vadd.f32 %v141, %v144
      %146 = vst [vmem:[%s140] sm:$0xff] %v145
    $region29: #{tpu_custom_call.1} parent=1 // pred_fallthru
      _
    // Predicated region
    $region30: #{tpu_custom_call.1} parent=1 // pred_check
      _
    $region31: #{tpu_custom_call.1} parent=1 // pred_check_branch
      %148 = sbr.rel (0) target = $region33
    $region32: #{tpu_custom_call.1} parent=1 // pred_region
      %s150 = ssub.s32 256, 256
      %151 = vsyncadd [#allocation4], %s150
      %s152 = sshll.u32 [#allocation7], 4
      %s153 = int_to_ptr.vmem [resolvable:$true] %s152
      %158 = dma.vmem_to_hbm [thread:$0]  %s153, 256, %s2, [#allocation4], 128, 128, 8
    $region33: #{tpu_custom_call.1} parent=1 // pred_fallthru
      _
    // Predicated region
    $region34: #{tpu_custom_call.1} parent=1 // pred_check
      _
    $region35: #{tpu_custom_call.1} parent=1 // pred_check_branch
      %160 = sbr.rel (0) target = $region37
    $region36: #{tpu_custom_call.1} parent=1 // pred_region
      %161 = dma.done [#allocation4], 256
    $region37: #{tpu_custom_call.1} parent=1 // pred_fallthru
      _
    %162 = vsyncpa [#allocation3], 1
    %163 = vsyncpa [#allocation6], 1
    %164 = vsyncpa [#allocation4], 1

</llo_original>
